<compile_context>
chip_gen: v7x
topology: tpu7x:2x2x1
jax: 0.10.0
libtpu: 0.0.40
codegen_flags: <defaults>
</compile_context>

<pallas_src>
import functools

import jax
import jax.numpy as jnp
from jax.experimental import pallas as pl
from jax.experimental.pallas import tpu as pltpu

INPUT_SIZE = 60          # d_prime
NUM_CLASSES = 6
HIDDEN = (128, 90, 64, 32)

# Per-layer padded output widths: 90 -> 128 (lane-friendly), 6 -> 8 (narrow
# contiguous output slab, sliced back to 6 in the wrapper).
OUT_PAD = (128, 128, 64, 32, 8)
# Per-layer padded input widths (layer i input == layer i-1 padded output;
# x itself stays unpadded at 60 — Mosaic handles the K=60 contraction).
IN_PAD = (INPUT_SIZE, 128, 128, 64, 32)

TILE_B_MAX = 4096        # rows per grid step (~10 MiB VMEM at 4096)


def _round_up(x, m):
    return (x + m - 1) // m * m


def _has_bf16_vpu():
    """bf16 VALU exists on v6e and later; keep the f32 ReLU path on <= v5."""
    try:
        kind = jax.devices()[0].device_kind.lower()
    except Exception:
        return False
    return not any(t in kind for t in ("v2", "v3", "v4", "v5"))


def mlp_kernel(x_ref,
               w1_ref, b1_ref,
               w2_ref, b2_ref,
               w3_ref, b3_ref,
               w4_ref, b4_ref,
               w5_ref, b5_ref,
               out_ref, *, bf16_relu):
    def layer(h_bf16, w_ref, b_ref):
        # MXU: bf16 x bf16 -> f32 accumulation; bias-add stays f32 on the VPU.
        acc = jnp.dot(h_bf16, w_ref[...],
                      preferred_element_type=jnp.float32) + b_ref[...]
        if bf16_relu:
            # v6e/v7x: ReLU on packed bf16 (cast is needed for the next dot anyway).
            return jnp.maximum(acc.astype(jnp.bfloat16), 0.0)
        # v5e and earlier: no bf16 VPU — ReLU in f32, then pack.
        return jnp.maximum(acc, 0.0).astype(jnp.bfloat16)

    h = x_ref[...].astype(jnp.bfloat16)   # fused pad/cast: raw f32 x tile -> bf16
    h = layer(h, w1_ref, b1_ref)
    h = layer(h, w2_ref, b2_ref)
    h = layer(h, w3_ref, b3_ref)
    h = layer(h, w4_ref, b4_ref)
    # Final layer: no ReLU, f32 logits, narrow (tile_b, 8) store.
    out_ref[...] = (jnp.dot(h, w5_ref[...], preferred_element_type=jnp.float32)
                    + b5_ref[...])


def neural_net_forward(x, params):
    """x: (B, INPUT_SIZE) f32.
    params: list of (W_t bf16 (in_pad, out_pad), b f32 (1, out_pad)) from prepare_params."""
    B = x.shape[0]
    # Aim for >= 2 grid steps when possible (v7x dual-TC), cap tile size,
    # 16-row align (bf16 sublane packing), never exceed the (rounded) batch.
    n_tiles = max(2, pl.cdiv(B, TILE_B_MAX))
    tile_b = min(max(16, _round_up(pl.cdiv(B, n_tiles), 16)), _round_up(B, 8))
    grid = (pl.cdiv(B, tile_b),)

    flat_args = [x]
    in_specs = [pl.BlockSpec((tile_b, INPUT_SIZE), lambda i: (i, 0))]
    for w_t, b in params:
        flat_args.extend([w_t, b])
        # Full-array blocks, constant index_map: DMA'd once, VMEM-resident.
        in_specs.append(pl.BlockSpec(w_t.shape, lambda i: (0, 0)))
        in_specs.append(pl.BlockSpec(b.shape, lambda i: (0, 0)))

    kernel = functools.partial(mlp_kernel, bf16_relu=_has_bf16_vpu())
    out = pl.pallas_call(
        kernel,
        out_shape=jax.ShapeDtypeStruct((B, OUT_PAD[-1]), jnp.float32),
        grid=grid,
        in_specs=in_specs,
        out_specs=pl.BlockSpec((tile_b, OUT_PAD[-1]), lambda i: (i, 0)),
        compiler_params=pltpu.CompilerParams(
            dimension_semantics=("parallel",)),
    )(*flat_args)

    return out[:, :NUM_CLASSES]


def init_params(key, input_size=INPUT_SIZE, num_classes=NUM_CLASSES):
    """Deterministic init mimicking PyTorch nn.Linear default
    (U[-1/sqrt(fan_in), +1/sqrt(fan_in)]). Returns unpadded f32 (W_t, b)."""
    dims = (input_size,) + HIDDEN + (num_classes,)
    params = []
    for i in range(len(dims) - 1):
        fan_in, fan_out = dims[i], dims[i + 1]
        key, kw, kb = jax.random.split(key, 3)
        bound = 1.0 / jnp.sqrt(jnp.float32(fan_in))
        # Stored already transposed: (in, out) so the kernel computes x @ W + b.
        w_t = jax.random.uniform(kw, (fan_in, fan_out), jnp.float32, -bound, bound)
        b = jax.random.uniform(kb, (1, fan_out), jnp.float32, -bound, bound)
        params.append((w_t, b))
    return params


def prepare_params(params_f32):
    """Zero-pad each layer to (IN_PAD[i], OUT_PAD[i]); weights bf16 (MXU inputs), biases f32."""
    prepared = []
    for i, (w_t, b) in enumerate(params_f32):
        in_pad, out_pad = IN_PAD[i], OUT_PAD[i]
        w_p = jnp.zeros((in_pad, out_pad), jnp.float32)
        w_p = w_p.at[:w_t.shape[0], :w_t.shape[1]].set(w_t)
        b_p = jnp.zeros((1, out_pad), jnp.float32)
        b_p = b_p.at[:, :b.shape[1]].set(b)
        prepared.append((w_p.astype(jnp.bfloat16), b_p))
    return prepared


def reference_forward(x, kernel_params):
    """Pure-JAX f32 reference using the same (bf16-rounded, zero-padded) weights."""
    h = x.astype(jnp.float32)
    n = len(kernel_params)
    for i, (w_t, b) in enumerate(kernel_params):
        h = h @ w_t.astype(jnp.float32) + b
        if i < n - 1:
            h = jnp.maximum(h, 0.0)
    return h[:, :NUM_CLASSES]


if __name__ == "__main__":
    key = jax.random.PRNGKey(0)
    key, kx = jax.random.split(key)

    batch = 8
    x = jax.random.normal(kx, (batch, INPUT_SIZE), jnp.float32)

    params_f32 = init_params(key)
    kernel_params = prepare_params(params_f32)

    out = neural_net_forward(x, kernel_params)
    out = jax.block_until_ready(out)

    ref = reference_forward(x, kernel_params)
    assert out.shape == (batch, NUM_CLASSES)
    # bf16 matmul inputs with f32 accumulation: loosen tolerance vs f32 reference.
    assert jnp.allclose(out, ref, atol=5e-2, rtol=5e-2), "Pallas output mismatch vs JAX reference"

    print("KERNEL_OK")
</pallas_src>

<mosaic_0001>
module attributes {stable_mosaic.version = 11 : i64} {
  func.func @mlp_kernel(%arg0: i32, %arg1: memref<8x60xf32, #tpu.memory_space<vmem>>, %arg2: memref<60x128xbf16, #tpu.memory_space<vmem>>, %arg3: memref<1x128xf32, #tpu.memory_space<vmem>>, %arg4: memref<128x128xbf16, #tpu.memory_space<vmem>>, %arg5: memref<1x128xf32, #tpu.memory_space<vmem>>, %arg6: memref<128x64xbf16, #tpu.memory_space<vmem>>, %arg7: memref<1x64xf32, #tpu.memory_space<vmem>>, %arg8: memref<64x32xbf16, #tpu.memory_space<vmem>>, %arg9: memref<1x32xf32, #tpu.memory_space<vmem>>, %arg10: memref<32x8xbf16, #tpu.memory_space<vmem>>, %arg11: memref<1x8xf32, #tpu.memory_space<vmem>>, %arg12: memref<8x8xf32, #tpu.memory_space<vmem>>) attributes {dimension_semantics = [#tpu.dimension_semantics<parallel>], iteration_bounds = array<i64: 1>, scalar_prefetch = 0 : i64, scratch_operands = 0 : i64, tpu.core_type = #tpu.core_type<tc>, window_params = [{transform_indices = @transform_0, window_bounds = array<i64: 8, 60>}, {pipeline_mode = #tpu.pipeline_mode<synchronous>, transform_indices = @transform_1, window_bounds = array<i64: 60, 128>}, {pipeline_mode = #tpu.pipeline_mode<synchronous>, transform_indices = @transform_2, window_bounds = array<i64: 1, 128>}, {pipeline_mode = #tpu.pipeline_mode<synchronous>, transform_indices = @transform_3, window_bounds = array<i64: 128, 128>}, {pipeline_mode = #tpu.pipeline_mode<synchronous>, transform_indices = @transform_4, window_bounds = array<i64: 1, 128>}, {pipeline_mode = #tpu.pipeline_mode<synchronous>, transform_indices = @transform_5, window_bounds = array<i64: 128, 64>}, {pipeline_mode = #tpu.pipeline_mode<synchronous>, transform_indices = @transform_6, window_bounds = array<i64: 1, 64>}, {pipeline_mode = #tpu.pipeline_mode<synchronous>, transform_indices = @transform_7, window_bounds = array<i64: 64, 32>}, {pipeline_mode = #tpu.pipeline_mode<synchronous>, transform_indices = @transform_8, window_bounds = array<i64: 1, 32>}, {pipeline_mode = #tpu.pipeline_mode<synchronous>, transform_indices = @transform_9, window_bounds = array<i64: 32, 8>}, {pipeline_mode = #tpu.pipeline_mode<synchronous>, transform_indices = @transform_10, window_bounds = array<i64: 1, 8>}, {transform_indices = @transform_11, window_bounds = array<i64: 8, 8>}]} {
    %c0 = arith.constant 0 : index
    %c0_0 = arith.constant 0 : index
    %0 = vector.load %arg1[%c0, %c0_0] : memref<8x60xf32, #tpu.memory_space<vmem>>, vector<8x60xf32>
    %1 = arith.truncf %0 : vector<8x60xf32> to vector<8x60xbf16>
    %c0_1 = arith.constant 0 : index
    %c0_2 = arith.constant 0 : index
    %2 = vector.load %arg2[%c0_1, %c0_2] : memref<60x128xbf16, #tpu.memory_space<vmem>>, vector<60x128xbf16>
    %cst = arith.constant dense<0.000000e+00> : vector<8x128xf32>
    %3 = tpu.matmul %1, %2, %cst {dimension_numbers = #tpu.dot_dimension_numbers<[1], [0], [0], [1], [0, 0, 1, 1], [], []>} : vector<8x60xbf16>, vector<60x128xbf16>, vector<8x128xf32> -> vector<8x128xf32>
    %c0_3 = arith.constant 0 : index
    %c0_4 = arith.constant 0 : index
    %4 = vector.load %arg3[%c0_3, %c0_4] : memref<1x128xf32, #tpu.memory_space<vmem>>, vector<1x128xf32>
    %5 = vector.broadcast %4 : vector<1x128xf32> to vector<8x128xf32>
    %6 = arith.addf %3, %5 : vector<8x128xf32>
    %7 = arith.truncf %6 : vector<8x128xf32> to vector<8x128xbf16>
    %cst_5 = arith.constant 0.000000e+00 : bf16
    %8 = vector.broadcast %cst_5 : bf16 to vector<8x128xbf16>
    %9 = arith.maximumf %7, %8 : vector<8x128xbf16>
    %c0_6 = arith.constant 0 : index
    %c0_7 = arith.constant 0 : index
    %10 = vector.load %arg4[%c0_6, %c0_7] : memref<128x128xbf16, #tpu.memory_space<vmem>>, vector<128x128xbf16>
    %cst_8 = arith.constant dense<0.000000e+00> : vector<8x128xf32>
    %11 = tpu.matmul %9, %10, %cst_8 {dimension_numbers = #tpu.dot_dimension_numbers<[1], [0], [0], [1], [0, 0, 1, 1], [], []>} : vector<8x128xbf16>, vector<128x128xbf16>, vector<8x128xf32> -> vector<8x128xf32>
    %c0_9 = arith.constant 0 : index
    %c0_10 = arith.constant 0 : index
    %12 = vector.load %arg5[%c0_9, %c0_10] : memref<1x128xf32, #tpu.memory_space<vmem>>, vector<1x128xf32>
    %13 = vector.broadcast %12 : vector<1x128xf32> to vector<8x128xf32>
    %14 = arith.addf %11, %13 : vector<8x128xf32>
    %15 = arith.truncf %14 : vector<8x128xf32> to vector<8x128xbf16>
    %cst_11 = arith.constant 0.000000e+00 : bf16
    %16 = vector.broadcast %cst_11 : bf16 to vector<8x128xbf16>
    %17 = arith.maximumf %15, %16 : vector<8x128xbf16>
    %c0_12 = arith.constant 0 : index
    %c0_13 = arith.constant 0 : index
    %18 = vector.load %arg6[%c0_12, %c0_13] : memref<128x64xbf16, #tpu.memory_space<vmem>>, vector<128x64xbf16>
    %cst_14 = arith.constant dense<0.000000e+00> : vector<8x64xf32>
    %19 = tpu.matmul %17, %18, %cst_14 {dimension_numbers = #tpu.dot_dimension_numbers<[1], [0], [0], [1], [0, 0, 1, 1], [], []>} : vector<8x128xbf16>, vector<128x64xbf16>, vector<8x64xf32> -> vector<8x64xf32>
    %c0_15 = arith.constant 0 : index
    %c0_16 = arith.constant 0 : index
    %20 = vector.load %arg7[%c0_15, %c0_16] : memref<1x64xf32, #tpu.memory_space<vmem>>, vector<1x64xf32>
    %21 = vector.broadcast %20 : vector<1x64xf32> to vector<8x64xf32>
    %22 = arith.addf %19, %21 : vector<8x64xf32>
    %23 = arith.truncf %22 : vector<8x64xf32> to vector<8x64xbf16>
    %cst_17 = arith.constant 0.000000e+00 : bf16
    %24 = vector.broadcast %cst_17 : bf16 to vector<8x64xbf16>
    %25 = arith.maximumf %23, %24 : vector<8x64xbf16>
    %c0_18 = arith.constant 0 : index
    %c0_19 = arith.constant 0 : index
    %26 = vector.load %arg8[%c0_18, %c0_19] : memref<64x32xbf16, #tpu.memory_space<vmem>>, vector<64x32xbf16>
    %cst_20 = arith.constant dense<0.000000e+00> : vector<8x32xf32>
    %27 = tpu.matmul %25, %26, %cst_20 {dimension_numbers = #tpu.dot_dimension_numbers<[1], [0], [0], [1], [0, 0, 1, 1], [], []>} : vector<8x64xbf16>, vector<64x32xbf16>, vector<8x32xf32> -> vector<8x32xf32>
    %c0_21 = arith.constant 0 : index
    %c0_22 = arith.constant 0 : index
    %28 = vector.load %arg9[%c0_21, %c0_22] : memref<1x32xf32, #tpu.memory_space<vmem>>, vector<1x32xf32>
    %29 = vector.broadcast %28 : vector<1x32xf32> to vector<8x32xf32>
    %30 = arith.addf %27, %29 : vector<8x32xf32>
    %31 = arith.truncf %30 : vector<8x32xf32> to vector<8x32xbf16>
    %cst_23 = arith.constant 0.000000e+00 : bf16
    %32 = vector.broadcast %cst_23 : bf16 to vector<8x32xbf16>
    %33 = arith.maximumf %31, %32 : vector<8x32xbf16>
    %c0_24 = arith.constant 0 : index
    %c0_25 = arith.constant 0 : index
    %34 = vector.load %arg10[%c0_24, %c0_25] : memref<32x8xbf16, #tpu.memory_space<vmem>>, vector<32x8xbf16>
    %cst_26 = arith.constant dense<0.000000e+00> : vector<8x8xf32>
    %35 = tpu.matmul %33, %34, %cst_26 {dimension_numbers = #tpu.dot_dimension_numbers<[1], [0], [0], [1], [0, 0, 1, 1], [], []>} : vector<8x32xbf16>, vector<32x8xbf16>, vector<8x8xf32> -> vector<8x8xf32>
    %c0_27 = arith.constant 0 : index
    %c0_28 = arith.constant 0 : index
    %36 = vector.load %arg11[%c0_27, %c0_28] : memref<1x8xf32, #tpu.memory_space<vmem>>, vector<1x8xf32>
    %37 = vector.broadcast %36 : vector<1x8xf32> to vector<8x8xf32>
    %38 = arith.addf %35, %37 : vector<8x8xf32>
    %c0_29 = arith.constant 0 : index
    %c0_30 = arith.constant 0 : index
    %39 = vector.load %arg12[%c0_29, %c0_30] : memref<8x8xf32, #tpu.memory_space<vmem>>, vector<8x8xf32>
    tpu.vector_store %arg12[%c0_29, %c0_30], %38 {strides = array<i32>} : memref<8x8xf32, #tpu.memory_space<vmem>>, vector<8x8xf32>,
    return
  }
  func.func @transform_0(%arg0: i32) -> (i32, i32) {
    %c0_i32 = arith.constant 0 : i32
    %c0_i32_0 = arith.constant 0 : i32
    return %arg0, %c0_i32 : i32, i32
  }
  func.func @transform_1(%arg0: i32) -> (i32, i32) {
    %c0_i32 = arith.constant 0 : i32
    %c0_i32_0 = arith.constant 0 : i32
    %c0_i32_1 = arith.constant 0 : i32
    return %c0_i32, %c0_i32_0 : i32, i32
  }
  func.func @transform_2(%arg0: i32) -> (i32, i32) {
    %c0_i32 = arith.constant 0 : i32
    %c0_i32_0 = arith.constant 0 : i32
    %c0_i32_1 = arith.constant 0 : i32
    return %c0_i32, %c0_i32_0 : i32, i32
  }
  func.func @transform_3(%arg0: i32) -> (i32, i32) {
    %c0_i32 = arith.constant 0 : i32
    %c0_i32_0 = arith.constant 0 : i32
    %c0_i32_1 = arith.constant 0 : i32
    return %c0_i32, %c0_i32_0 : i32, i32
  }
  func.func @transform_4(%arg0: i32) -> (i32, i32) {
    %c0_i32 = arith.constant 0 : i32
    %c0_i32_0 = arith.constant 0 : i32
    %c0_i32_1 = arith.constant 0 : i32
    return %c0_i32, %c0_i32_0 : i32, i32
  }
  func.func @transform_5(%arg0: i32) -> (i32, i32) {
    %c0_i32 = arith.constant 0 : i32
    %c0_i32_0 = arith.constant 0 : i32
    %c0_i32_1 = arith.constant 0 : i32
    return %c0_i32, %c0_i32_0 : i32, i32
  }
  func.func @transform_6(%arg0: i32) -> (i32, i32) {
    %c0_i32 = arith.constant 0 : i32
    %c0_i32_0 = arith.constant 0 : i32
    %c0_i32_1 = arith.constant 0 : i32
    return %c0_i32, %c0_i32_0 : i32, i32
  }
  func.func @transform_7(%arg0: i32) -> (i32, i32) {
    %c0_i32 = arith.constant 0 : i32
    %c0_i32_0 = arith.constant 0 : i32
    %c0_i32_1 = arith.constant 0 : i32
    return %c0_i32, %c0_i32_0 : i32, i32
  }
  func.func @transform_8(%arg0: i32) -> (i32, i32) {
    %c0_i32 = arith.constant 0 : i32
    %c0_i32_0 = arith.constant 0 : i32
    %c0_i32_1 = arith.constant 0 : i32
    return %c0_i32, %c0_i32_0 : i32, i32
  }
  func.func @transform_9(%arg0: i32) -> (i32, i32) {
    %c0_i32 = arith.constant 0 : i32
    %c0_i32_0 = arith.constant 0 : i32
    %c0_i32_1 = arith.constant 0 : i32
    return %c0_i32, %c0_i32_0 : i32, i32
  }
  func.func @transform_10(%arg0: i32) -> (i32, i32) {
    %c0_i32 = arith.constant 0 : i32
    %c0_i32_0 = arith.constant 0 : i32
    %c0_i32_1 = arith.constant 0 : i32
    return %c0_i32, %c0_i32_0 : i32, i32
  }
  func.func @transform_11(%arg0: i32) -> (i32, i32) {
    %c0_i32 = arith.constant 0 : i32
    %c0_i32_0 = arith.constant 0 : i32
    return %arg0, %c0_i32 : i32, i32
  }
}

</mosaic_0001>

<llo_original>
// kernel: tpu_custom_call.1
$region0: #{tpu_custom_call.1}
  #allocation0 [shape = 'u32[]', space=smem, size = 0x4, offset = 0x4, fixed_abs, tag = 'smem constant byte address 0x4 - core index']
  #allocation1 [shape = 'u32[144,128]{1,0:T(1,128)}', space=vmem, size = 0x12000, scoped, tag = 'internal scratch']
  %s0 = inlined_call_operand.vmem [shape: f32[8,60], index: 0, kind: input, shape index: {}]
  %s1 = inlined_call_operand.vmem [shape: bf16[60,128], index: 1, kind: input, shape index: {}]
  %s2 = inlined_call_operand.vmem [shape: f32[1,128], index: 2, kind: input, shape index: {}]
  %s3 = inlined_call_operand.vmem [shape: bf16[128,128], index: 3, kind: input, shape index: {}]
  %s4 = inlined_call_operand.vmem [shape: f32[1,128], index: 4, kind: input, shape index: {}]
  %s5 = inlined_call_operand.vmem [shape: bf16[128,64], index: 5, kind: input, shape index: {}]
  %s6 = inlined_call_operand.vmem [shape: f32[1,64], index: 6, kind: input, shape index: {}]
  %s7 = inlined_call_operand.vmem [shape: bf16[64,32], index: 7, kind: input, shape index: {}]
  %s8 = inlined_call_operand.vmem [shape: f32[1,32], index: 8, kind: input, shape index: {}]
  %s9 = inlined_call_operand.vmem [shape: bf16[32,8], index: 9, kind: input, shape index: {}]
  %s10 = inlined_call_operand.vmem [shape: f32[1,8], index: 10, kind: input, shape index: {}]
  %s11 = inlined_call_operand.hbm [shape: f32[8,8], index: 11, kind: output, shape index: {}]
  %s12 = sld [smem:[#allocation0]]
  $region54: #{tpu_custom_call.1} parent=0
    _
  %s14 = ssub.s32 1, %s12
  %s15 = scalar_select 0, %s14, %s12
  $region1: #{tpu_custom_call.1} parent=0
    #allocation2 [shape = 'u8[4096]{0}', space=vmem, size = 0x1000, scoped, tag = 'output window, operand 0, single buffered']
    #allocation3 [shape = 's32[1]{0}', space=sflag, size = 0x4, scoped, tag = 'scoped memory for tpu_custom_call.1']
    %16 = vsyncpa [#allocation3], 0
    // Predicated region
    $region2: #{tpu_custom_call.1} parent=1 // pred_check
      _
    $region3: #{tpu_custom_call.1} parent=1 // pred_check_branch
      %18 = sbr.rel (0) target = $region5
    $region4: #{tpu_custom_call.1} parent=1 // pred_region
      _
    $region5: #{tpu_custom_call.1} parent=1 // pred_fallthru
      _
    // Predicated region
    $region6: #{tpu_custom_call.1} parent=1 // pred_check
      _
    $region7: #{tpu_custom_call.1} parent=1 // pred_check_branch
      %20 = sbr.rel (0) target = $region9
    $region8: #{tpu_custom_call.1} parent=1 // pred_region
      _
    $region9: #{tpu_custom_call.1} parent=1 // pred_fallthru
      _
    // Predicated region
    $region10: #{tpu_custom_call.1} parent=1 // pred_check
      _
    $region11: #{tpu_custom_call.1} parent=1 // pred_check_branch
      %22 = sbr.rel (0) target = $region13
    $region12: #{tpu_custom_call.1} parent=1 // pred_region
      _
    $region13: #{tpu_custom_call.1} parent=1 // pred_fallthru
      _
    // Predicated region
    $region14: #{tpu_custom_call.1} parent=1 // pred_check
      _
    $region15: #{tpu_custom_call.1} parent=1 // pred_check_branch
      %24 = sbr.rel (0) target = $region17
    $region16: #{tpu_custom_call.1} parent=1 // pred_region
      _
    $region17: #{tpu_custom_call.1} parent=1 // pred_fallthru
      _
    // Predicated region
    $region18: #{tpu_custom_call.1} parent=1 // pred_check
      _
    $region19: #{tpu_custom_call.1} parent=1 // pred_check_branch
      %26 = sbr.rel (0) target = $region21
    $region20: #{tpu_custom_call.1} parent=1 // pred_region
      _
    $region21: #{tpu_custom_call.1} parent=1 // pred_fallthru
      _
    // Predicated region
    $region22: #{tpu_custom_call.1} parent=1 // pred_check
      _
    $region23: #{tpu_custom_call.1} parent=1 // pred_check_branch
      %28 = sbr.rel (0) target = $region25
    $region24: #{tpu_custom_call.1} parent=1 // pred_region
      _
    $region25: #{tpu_custom_call.1} parent=1 // pred_fallthru
      _
    // Predicated region
    $region26: #{tpu_custom_call.1} parent=1 // pred_check
      _
    $region27: #{tpu_custom_call.1} parent=1 // pred_check_branch
      %30 = sbr.rel (0) target = $region29
    $region28: #{tpu_custom_call.1} parent=1 // pred_region
      _
    $region29: #{tpu_custom_call.1} parent=1 // pred_fallthru
      _
    // Predicated region
    $region30: #{tpu_custom_call.1} parent=1 // pred_check
      _
    $region31: #{tpu_custom_call.1} parent=1 // pred_check_branch
      %32 = sbr.rel (0) target = $region33
    $region32: #{tpu_custom_call.1} parent=1 // pred_region
      _
    $region33: #{tpu_custom_call.1} parent=1 // pred_fallthru
      _
    // Predicated region
    $region34: #{tpu_custom_call.1} parent=1 // pred_check
      _
    $region35: #{tpu_custom_call.1} parent=1 // pred_check_branch
      %34 = sbr.rel (0) target = $region37
    $region36: #{tpu_custom_call.1} parent=1 // pred_region
      _
    $region37: #{tpu_custom_call.1} parent=1 // pred_fallthru
      _
    // Predicated region
    $region38: #{tpu_custom_call.1} parent=1 // pred_check
      _
    $region39: #{tpu_custom_call.1} parent=1 // pred_check_branch
      %36 = sbr.rel (0) target = $region41
    $region40: #{tpu_custom_call.1} parent=1 // pred_region
      _
    $region41: #{tpu_custom_call.1} parent=1 // pred_fallthru
      _
    // Predicated region
    $region42: #{tpu_custom_call.1} parent=1 // pred_check
      _
    $region43: #{tpu_custom_call.1} parent=1 // pred_check_branch
      %38 = sbr.rel (0) target = $region45
    $region44: #{tpu_custom_call.1} parent=1 // pred_region
      _
    $region45: #{tpu_custom_call.1} parent=1 // pred_fallthru
      _
    %v40 = vld [vmem:[%s0] sm:$0xff]
    %v41 = vpack.c.bf16 %v40, %v40
    %v42 = vld [vmem:[%s1] sm:$0xf]
    %v43 = vld [vmem:[%s1 + $0x4] sm:$0xf]
    %v44 = vld [vmem:[%s1 + $0x8] sm:$0xf]
    %v45 = vld [vmem:[%s1 + $0xc] sm:$0xf]
    %v46 = vld [vmem:[%s1 + $0x10] sm:$0xf]
    %v47 = vld [vmem:[%s1 + $0x14] sm:$0xf]
    %v48 = vld [vmem:[%s1 + $0x18] sm:$0xf]
    %v49 = vld [vmem:[%s1 + $0x1c] sm:$0x3]
    %v50 = vld [vmem:[%s2] sm:$0x1]
    %v52 = vlaneseq
    %v53 = vshrl.u32 %v52, 7
    %v54 = vsub.s32 0, %v53
    %v55 = vrot.slane %v50, %v54
    %v65 = vunpack.c.l.b16 %v42
    %v66 = vunpack.c.l.b16 %v43
    %v67 = vunpack.c.l.b16 %v44
    %v68 = vunpack.c.l.b16 %v45
    %v69 = vunpack.c.l.b16 %v46
    %v70 = vunpack.c.l.b16 %v47
    %v71 = vunpack.c.l.b16 %v48
    %v72 = vunpack.c.l.b16 %v49
    %v73 = vpack.c.b16 %v66, %v65
    %v74 = vpack.c.b16 %v68, %v67
    %v75 = vpack.c.b16 %v70, %v69
    %v76 = vpack.c.b16 %v72, %v71
    %vm80 = vcmask 490496
    %v82 = vsel %vm80, %v41, 0
    %vm84 = vcmask 1045504
    %v86 = vsel %vm84, %v76, 0
    %88 = vmatprep.subr.bf16.mxu0 0
    %89 = vmatpush1.bf16.msra.mxu0 %v73
    %90 = vmatprep.subr.bf16.mxu0 0
    %91 = vmatpush1.bf16.msra.mxu0 %v74
    %92 = vmatprep.subr.bf16.mxu0 0
    %93 = vmatpush1.bf16.msra.mxu0 %v75
    %94 = vmatprep.subr.bf16.mxu0 0
    %95 = vmatpush1.bf16.msra.mxu0 %v86
    %96 = vmatprep.subr.bf16.mxu0 0
    %97 = vmatpush1.bf16.msra.mxu0 0
    %98 = vmatprep.subr.bf16.mxu0 0
    %99 = vmatpush1.bf16.msra.mxu0 0
    %100 = vmatprep.subr.bf16.mxu0 0
    %101 = vmatpush1.bf16.msra.mxu0 0
    %102 = vmatprep.subr.bf16.mxu0 0
    %103 = vmatpush1.bf16.msra.mxu0 0
    %104 = vmatprep.subr.bf16.mxu0 0
    %105 = vmatpush1.bf16.msra.mxu0 0
    %106 = vmatprep.subr.bf16.mxu0 0
    %107 = vmatpush1.bf16.msra.mxu0 0
    %108 = vmatprep.subr.bf16.mxu0 0
    %109 = vmatpush1.bf16.msra.mxu0 0
    %110 = vmatprep.subr.bf16.mxu0 0
    %111 = vmatpush1.bf16.msra.mxu0 0
    %112 = vmatprep.subr.bf16.mxu0 0
    %113 = vmatpush1.bf16.msra.mxu0 0
    %114 = vmatprep.subr.bf16.mxu0 0
    %115 = vmatpush1.bf16.msra.mxu0 0
    %116 = vmatprep.subr.bf16.mxu0 0
    %117 = vmatpush1.bf16.msra.mxu0 0
    %118 = vmatprep.subr.bf16.mxu0 0
    %119 = vmatpush1.bf16.msra.mxu0 0
    %120 = vmatprep.mubr.bf16.mxu0 0
    %121 = vmatmul.mubr.bf16.gmra.mrb[0].mxu0 %v82
    %v122 = vpop.f32.mrb[0].mxu0
    %v123 = vadd.f32 %v55, %v122
    %v124 = vpop.f32.mrb[0].mxu0
    %v125 = vpop.f32.mrb[0].mxu0
    %v126 = vpop.f32.mrb[0].mxu0
    %127 = vdwg.mxu0
    %v128 = vpack.c.bf16 %v123, %v123
    %v129 = vmax.bf16 %v128, 0
    %v130 = vld [vmem:[%s3] sm:$0xf]
    %v131 = vld [vmem:[%s3 + $0x4] sm:$0xf]
    %v132 = vld [vmem:[%s3 + $0x8] sm:$0xf]
    %v133 = vld [vmem:[%s3 + $0xc] sm:$0xf]
    %v134 = vld [vmem:[%s3 + $0x10] sm:$0xf]
    %v135 = vld [vmem:[%s3 + $0x14] sm:$0xf]
    %v136 = vld [vmem:[%s3 + $0x18] sm:$0xf]
    %v137 = vld [vmem:[%s3 + $0x1c] sm:$0xf]
    %v138 = vld [vmem:[%s3 + $0x20] sm:$0xf]
    %v139 = vld [vmem:[%s3 + $0x24] sm:$0xf]
    %v140 = vld [vmem:[%s3 + $0x28] sm:$0xf]
    %v141 = vld [vmem:[%s3 + $0x2c] sm:$0xf]
    %v142 = vld [vmem:[%s3 + $0x30] sm:$0xf]
    %v143 = vld [vmem:[%s3 + $0x34] sm:$0xf]
    %v144 = vld [vmem:[%s3 + $0x38] sm:$0xf]
    %v145 = vld [vmem:[%s3 + $0x3c] sm:$0xf]
    %v146 = vld [vmem:[%s4] sm:$0x1]
    %v148 = vlaneseq
    %v149 = vshrl.u32 %v148, 7
    %v150 = vsub.s32 0, %v149
    %v151 = vrot.slane %v146, %v150
    %v169 = vunpack.c.l.b16 %v130
    %v170 = vunpack.c.l.b16 %v131
    %v171 = vunpack.c.l.b16 %v132
    %v172 = vunpack.c.l.b16 %v133
    %v173 = vunpack.c.l.b16 %v134
    %v174 = vunpack.c.l.b16 %v135
    %v175 = vunpack.c.l.b16 %v136
    %v176 = vunpack.c.l.b16 %v137
    %v177 = vunpack.c.l.b16 %v138
    %v178 = vunpack.c.l.b16 %v139
    %v179 = vunpack.c.l.b16 %v140
    %v180 = vunpack.c.l.b16 %v141
    %v181 = vunpack.c.l.b16 %v142
    %v182 = vunpack.c.l.b16 %v143
    %v183 = vunpack.c.l.b16 %v144
    %v184 = vunpack.c.l.b16 %v145
    %v185 = vpack.c.b16 %v170, %v169
    %v186 = vpack.c.b16 %v172, %v171
    %v187 = vpack.c.b16 %v174, %v173
    %v188 = vpack.c.b16 %v176, %v175
    %v189 = vpack.c.b16 %v178, %v177
    %v190 = vpack.c.b16 %v180, %v179
    %v191 = vpack.c.b16 %v182, %v181
    %v192 = vpack.c.b16 %v184, %v183
    %201 = vmatprep.subr.bf16.mxu0 0
    %202 = vmatpush1.bf16.msra.mxu0 %v185
    %203 = vmatprep.subr.bf16.mxu0 0
    %204 = vmatpush1.bf16.msra.mxu0 %v186
    %205 = vmatprep.subr.bf16.mxu0 0
    %206 = vmatpush1.bf16.msra.mxu0 %v187
    %207 = vmatprep.subr.bf16.mxu0 0
    %208 = vmatpush1.bf16.msra.mxu0 %v188
    %209 = vmatprep.subr.bf16.mxu0 0
    %210 = vmatpush1.bf16.msra.mxu0 %v189
    %211 = vmatprep.subr.bf16.mxu0 0
    %212 = vmatpush1.bf16.msra.mxu0 %v190
    %213 = vmatprep.subr.bf16.mxu0 0
    %214 = vmatpush1.bf16.msra.mxu0 %v191
    %215 = vmatprep.subr.bf16.mxu0 0
    %216 = vmatpush1.bf16.msra.mxu0 %v192
    %217 = vmatprep.subr.bf16.mxu0 0
    %218 = vmatpush1.bf16.msra.mxu0 0
    %219 = vmatprep.subr.bf16.mxu0 0
    %220 = vmatpush1.bf16.msra.mxu0 0
    %221 = vmatprep.subr.bf16.mxu0 0
    %222 = vmatpush1.bf16.msra.mxu0 0
    %223 = vmatprep.subr.bf16.mxu0 0
    %224 = vmatpush1.bf16.msra.mxu0 0
    %225 = vmatprep.subr.bf16.mxu0 0
    %226 = vmatpush1.bf16.msra.mxu0 0
    %227 = vmatprep.subr.bf16.mxu0 0
    %228 = vmatpush1.bf16.msra.mxu0 0
    %229 = vmatprep.subr.bf16.mxu0 0
    %230 = vmatpush1.bf16.msra.mxu0 0
    %231 = vmatprep.subr.bf16.mxu0 0
    %232 = vmatpush1.bf16.msra.mxu0 0
    %233 = vmatprep.mubr.bf16.mxu0 0
    %234 = vmatmul.mubr.bf16.gmra.mrb[0].mxu0 %v129
    %v235 = vpop.f32.mrb[0].mxu0
    %v236 = vadd.f32 %v151, %v235
    %v237 = vpop.f32.mrb[0].mxu0
    %v238 = vpop.f32.mrb[0].mxu0
    %v239 = vpop.f32.mrb[0].mxu0
    %240 = vdwg.mxu0
    %v241 = vpack.c.bf16 %v236, %v236
    %v242 = vmax.bf16 %v241, 0
    %v243 = vld [vmem:[%s5] sm:$0xf]
    %v244 = vld [vmem:[%s5 + $0x4] sm:$0xf]
    %v245 = vld [vmem:[%s5 + $0x8] sm:$0xf]
    %v246 = vld [vmem:[%s5 + $0xc] sm:$0xf]
    %v247 = vld [vmem:[%s5 + $0x10] sm:$0xf]
    %v248 = vld [vmem:[%s5 + $0x14] sm:$0xf]
    %v249 = vld [vmem:[%s5 + $0x18] sm:$0xf]
    %v250 = vld [vmem:[%s5 + $0x1c] sm:$0xf]
    %v251 = vld [vmem:[%s5 + $0x20] sm:$0xf]
    %v252 = vld [vmem:[%s5 + $0x24] sm:$0xf]
    %v253 = vld [vmem:[%s5 + $0x28] sm:$0xf]
    %v254 = vld [vmem:[%s5 + $0x2c] sm:$0xf]
    %v255 = vld [vmem:[%s5 + $0x30] sm:$0xf]
    %v256 = vld [vmem:[%s5 + $0x34] sm:$0xf]
    %v257 = vld [vmem:[%s5 + $0x38] sm:$0xf]
    %v258 = vld [vmem:[%s5 + $0x3c] sm:$0xf]
    %v259 = vld [vmem:[%s6] sm:$0x1]
    %v261 = vlaneseq
    %v262 = vshrl.u32 %v261, 7
    %v263 = vsub.s32 0, %v262
    %v264 = vrot.slane %v259, %v263
    %v282 = vunpack.c.l.b16 %v243
    %v283 = vunpack.c.l.b16 %v244
    %v284 = vunpack.c.l.b16 %v245
    %v285 = vunpack.c.l.b16 %v246
    %v286 = vunpack.c.l.b16 %v247
    %v287 = vunpack.c.l.b16 %v248
    %v288 = vunpack.c.l.b16 %v249
    %v289 = vunpack.c.l.b16 %v250
    %v290 = vunpack.c.l.b16 %v251
    %v291 = vunpack.c.l.b16 %v252
    %v292 = vunpack.c.l.b16 %v253
    %v293 = vunpack.c.l.b16 %v254
    %v294 = vunpack.c.l.b16 %v255
    %v295 = vunpack.c.l.b16 %v256
    %v296 = vunpack.c.l.b16 %v257
    %v297 = vunpack.c.l.b16 %v258
    %v298 = vpack.c.b16 %v283, %v282
    %v299 = vpack.c.b16 %v285, %v284
    %v300 = vpack.c.b16 %v287, %v286
    %v301 = vpack.c.b16 %v289, %v288
    %v302 = vpack.c.b16 %v291, %v290
    %v303 = vpack.c.b16 %v293, %v292
    %v304 = vpack.c.b16 %v295, %v294
    %v305 = vpack.c.b16 %v297, %v296
    %314 = vmatprep.subr.bf16.mxu0 0
    %315 = vmatpush1.bf16.msra.mxu0 %v298
    %316 = vmatprep.subr.bf16.mxu0 0
    %317 = vmatpush1.bf16.msra.mxu0 %v299
    %318 = vmatprep.subr.bf16.mxu0 0
    %319 = vmatpush1.bf16.msra.mxu0 %v300
    %320 = vmatprep.subr.bf16.mxu0 0
    %321 = vmatpush1.bf16.msra.mxu0 %v301
    %322 = vmatprep.subr.bf16.mxu0 0
    %323 = vmatpush1.bf16.msra.mxu0 %v302
    %324 = vmatprep.subr.bf16.mxu0 0
    %325 = vmatpush1.bf16.msra.mxu0 %v303
    %326 = vmatprep.subr.bf16.mxu0 0
    %327 = vmatpush1.bf16.msra.mxu0 %v304
    %328 = vmatprep.subr.bf16.mxu0 0
    %329 = vmatpush1.bf16.msra.mxu0 %v305
    %330 = vmatprep.subr.bf16.mxu0 0
    %331 = vmatpush1.bf16.msra.mxu0 0
    %332 = vmatprep.subr.bf16.mxu0 0
    %333 = vmatpush1.bf16.msra.mxu0 0
    %334 = vmatprep.subr.bf16.mxu0 0
    %335 = vmatpush1.bf16.msra.mxu0 0
    %336 = vmatprep.subr.bf16.mxu0 0
    %337 = vmatpush1.bf16.msra.mxu0 0
    %338 = vmatprep.subr.bf16.mxu0 0
    %339 = vmatpush1.bf16.msra.mxu0 0
    %340 = vmatprep.subr.bf16.mxu0 0
    %341 = vmatpush1.bf16.msra.mxu0 0
    %342 = vmatprep.subr.bf16.mxu0 0
    %343 = vmatpush1.bf16.msra.mxu0 0
    %344 = vmatprep.subr.bf16.mxu0 0
    %345 = vmatpush1.bf16.msra.mxu0 0
    %346 = vmatprep.mubr.bf16.mxu0 0
    %347 = vmatmul.mubr.bf16.gmra.mrb[0].mxu0 %v242
    %v348 = vpop.f32.mrb[0].mxu0
    %v349 = vadd.f32 %v264, %v348
    %v350 = vpop.f32.mrb[0].mxu0
    %v351 = vpop.f32.mrb[0].mxu0
    %v352 = vpop.f32.mrb[0].mxu0
    %353 = vdwg.mxu0
    %v354 = vpack.c.bf16 %v349, %v349
    %v355 = vmax.bf16 %v354, 0
    %v356 = vld [vmem:[%s7] sm:$0xf]
    %v357 = vld [vmem:[%s7 + $0x4] sm:$0xf]
    %v358 = vld [vmem:[%s7 + $0x8] sm:$0xf]
    %v359 = vld [vmem:[%s7 + $0xc] sm:$0xf]
    %v360 = vld [vmem:[%s7 + $0x10] sm:$0xf]
    %v361 = vld [vmem:[%s7 + $0x14] sm:$0xf]
    %v362 = vld [vmem:[%s7 + $0x18] sm:$0xf]
    %v363 = vld [vmem:[%s7 + $0x1c] sm:$0xf]
    %v364 = vld [vmem:[%s8] sm:$0x1]
    %v366 = vlaneseq
    %v367 = vshrl.u32 %v366, 7
    %v368 = vsub.s32 0, %v367
    %v369 = vrot.slane %v364, %v368
    %v379 = vunpack.c.l.b16 %v356
    %v380 = vunpack.c.l.b16 %v357
    %v381 = vunpack.c.l.b16 %v358
    %v382 = vunpack.c.l.b16 %v359
    %v383 = vunpack.c.l.b16 %v360
    %v384 = vunpack.c.l.b16 %v361
    %v385 = vunpack.c.l.b16 %v362
    %v386 = vunpack.c.l.b16 %v363
    %v387 = vpack.c.b16 %v380, %v379
    %v388 = vpack.c.b16 %v382, %v381
    %v389 = vpack.c.b16 %v384, %v383
    %v390 = vpack.c.b16 %v386, %v385
    %vm395 = vcmask 523264
    %v397 = vsel %vm395, %v355, 0
    %399 = vmatprep.subr.bf16.mxu0 0
    %400 = vmatpush1.bf16.msra.mxu0 %v387
    %401 = vmatprep.subr.bf16.mxu0 0
    %402 = vmatpush1.bf16.msra.mxu0 %v388
    %403 = vmatprep.subr.bf16.mxu0 0
    %404 = vmatpush1.bf16.msra.mxu0 %v389
    %405 = vmatprep.subr.bf16.mxu0 0
    %406 = vmatpush1.bf16.msra.mxu0 %v390
    %407 = vmatprep.subr.bf16.mxu0 0
    %408 = vmatpush1.bf16.msra.mxu0 0
    %409 = vmatprep.subr.bf16.mxu0 0
    %410 = vmatpush1.bf16.msra.mxu0 0
    %411 = vmatprep.subr.bf16.mxu0 0
    %412 = vmatpush1.bf16.msra.mxu0 0
    %413 = vmatprep.subr.bf16.mxu0 0
    %414 = vmatpush1.bf16.msra.mxu0 0
    %415 = vmatprep.subr.bf16.mxu0 0
    %416 = vmatpush1.bf16.msra.mxu0 0
    %417 = vmatprep.subr.bf16.mxu0 0
    %418 = vmatpush1.bf16.msra.mxu0 0
    %419 = vmatprep.subr.bf16.mxu0 0
    %420 = vmatpush1.bf16.msra.mxu0 0
    %421 = vmatprep.subr.bf16.mxu0 0
    %422 = vmatpush1.bf16.msra.mxu0 0
    %423 = vmatprep.subr.bf16.mxu0 0
    %424 = vmatpush1.bf16.msra.mxu0 0
    %425 = vmatprep.subr.bf16.mxu0 0
    %426 = vmatpush1.bf16.msra.mxu0 0
    %427 = vmatprep.subr.bf16.mxu0 0
    %428 = vmatpush1.bf16.msra.mxu0 0
    %429 = vmatprep.subr.bf16.mxu0 0
    %430 = vmatpush1.bf16.msra.mxu0 0
    %431 = vmatprep.mubr.bf16.mxu0 0
    %432 = vmatmul.mubr.bf16.gmra.mrb[0].mxu0 %v397
    %v433 = vpop.f32.mrb[0].mxu0
    %v434 = vadd.f32 %v369, %v433
    %v435 = vpop.f32.mrb[0].mxu0
    %v436 = vpop.f32.mrb[0].mxu0
    %v437 = vpop.f32.mrb[0].mxu0
    %438 = vdwg.mxu0
    %v439 = vpack.c.bf16 %v434, %v434
    %v440 = vmax.bf16 %v439, 0
    %v441 = vld [vmem:[%s9] sm:$0xf]
    %v442 = vld [vmem:[%s9 + $0x4] sm:$0xf]
    %v443 = vld [vmem:[%s9 + $0x8] sm:$0xf]
    %v444 = vld [vmem:[%s9 + $0xc] sm:$0xf]
    %v445 = vld [vmem:[%s10] sm:$0x1]
    %v447 = vlaneseq
    %v448 = vshrl.u32 %v447, 7
    %v449 = vsub.s32 0, %v448
    %v450 = vrot.slane %v445, %v449
    %v456 = vunpack.c.l.b16 %v441
    %v457 = vunpack.c.l.b16 %v442
    %v458 = vunpack.c.l.b16 %v443
    %v459 = vunpack.c.l.b16 %v444
    %v460 = vpack.c.b16 %v457, %v456
    %v461 = vpack.c.b16 %v459, %v458
    %vm464 = vcmask 261120
    %v466 = vsel %vm464, %v440, 0
    %468 = vmatprep.subr.bf16.mxu0 0
    %469 = vmatpush1.bf16.msra.mxu0 %v460
    %470 = vmatprep.subr.bf16.mxu0 0
    %471 = vmatpush1.bf16.msra.mxu0 %v461
    %472 = vmatprep.subr.bf16.mxu0 0
    %473 = vmatpush1.bf16.msra.mxu0 0
    %474 = vmatprep.subr.bf16.mxu0 0
    %475 = vmatpush1.bf16.msra.mxu0 0
    %476 = vmatprep.subr.bf16.mxu0 0
    %477 = vmatpush1.bf16.msra.mxu0 0
    %478 = vmatprep.subr.bf16.mxu0 0
    %479 = vmatpush1.bf16.msra.mxu0 0
    %480 = vmatprep.subr.bf16.mxu0 0
    %481 = vmatpush1.bf16.msra.mxu0 0
    %482 = vmatprep.subr.bf16.mxu0 0
    %483 = vmatpush1.bf16.msra.mxu0 0
    %484 = vmatprep.subr.bf16.mxu0 0
    %485 = vmatpush1.bf16.msra.mxu0 0
    %486 = vmatprep.subr.bf16.mxu0 0
    %487 = vmatpush1.bf16.msra.mxu0 0
    %488 = vmatprep.subr.bf16.mxu0 0
    %489 = vmatpush1.bf16.msra.mxu0 0
    %490 = vmatprep.subr.bf16.mxu0 0
    %491 = vmatpush1.bf16.msra.mxu0 0
    %492 = vmatprep.subr.bf16.mxu0 0
    %493 = vmatpush1.bf16.msra.mxu0 0
    %494 = vmatprep.subr.bf16.mxu0 0
    %495 = vmatpush1.bf16.msra.mxu0 0
    %496 = vmatprep.subr.bf16.mxu0 0
    %497 = vmatpush1.bf16.msra.mxu0 0
    %498 = vmatprep.subr.bf16.mxu0 0
    %499 = vmatpush1.bf16.msra.mxu0 0
    %500 = vmatprep.mubr.bf16.mxu0 0
    %501 = vmatmul.mubr.bf16.gmra.mrb[0].mxu0 %v466
    %v502 = vpop.f32.mrb[0].mxu0
    %v503 = vadd.f32 %v450, %v502
    %v504 = vpop.f32.mrb[0].mxu0
    %v505 = vpop.f32.mrb[0].mxu0
    %v506 = vpop.f32.mrb[0].mxu0
    %507 = vdwg.mxu0
    %vm508 = vcmask 64512
    %509 = vst.msk [vmem:[#allocation2] sm:$0xff] %vm508, %v503
    // Predicated region
    $region46: #{tpu_custom_call.1} parent=1 // pred_check
      _
    $region47: #{tpu_custom_call.1} parent=1 // pred_check_branch
      %511 = sbr.rel (0) target = $region49
    $region48: #{tpu_custom_call.1} parent=1 // pred_region
      %s513 = ssub.s32 128, 128
      %514 = vsyncadd [#allocation3], %s513
      %s516 = sshll.u32 [#allocation2], 4
      %s517 = int_to_ptr.vmem [resolvable:$true] %s516
      %519 = dma.vmem_to_hbm [thread:$0]  %s517, 128, %s11, [#allocation3]
    $region49: #{tpu_custom_call.1} parent=1 // pred_fallthru
      _
    // Predicated region
    $region50: #{tpu_custom_call.1} parent=1 // pred_check
      _
    $region51: #{tpu_custom_call.1} parent=1 // pred_check_branch
      %521 = sbr.rel (0) target = $region53
    $region52: #{tpu_custom_call.1} parent=1 // pred_region
      %522 = dma.done [#allocation3], 128
    $region53: #{tpu_custom_call.1} parent=1 // pred_fallthru
      _
    %523 = vsyncpa [#allocation3], 1

</llo_original>
